<compile_context>
chip_gen: v7x
topology: tpu7x:2x2x1
jax: 0.10.0
libtpu: 0.0.40
codegen_flags: <defaults>
</compile_context>

<pallas_src>
import functools

import jax
import jax.numpy as jnp
from jax.experimental import pallas as pl
from jax.experimental.pallas import tpu as pltpu

_NEG_BIG = -1e30  # stands in for -inf on padded class columns (exp -> 0 exactly)


def _cdiv(a, b):
    return -(-a // b)


def _round_up(n, m):
    return _cdiv(n, m) * m


# --------------------------------------------------------------------------- #
# Kernel
# --------------------------------------------------------------------------- #
def _classifier_kernel(x_ref, w_ref, b_ref, o_ref):
    # x_ref: (TM, in_dim) f32; w_ref: (in_dim, out_pad) f32/bf16; b_ref: (1, out_pad) f32
    # In-kernel cast of x to the matmul dtype (bf16 path): keeps a single f32
    # HBM read of x; the cast is VPU work hidden under the MXU/DMA.
    x = x_ref[...].astype(w_ref.dtype)

    logits = jnp.dot(x, w_ref[...], preferred_element_type=jnp.float32) + b_ref[...]

    # Numerically-stable log_softmax over the class axis (PyTorch dim=1 for a
    # 2-D input). Padded columns hold ~-1e30: they never win the max and their
    # exp underflows to exactly 0, so the lse only sees the real classes.
    m = jnp.max(logits, axis=-1, keepdims=True)
    shifted = logits - m
    lse = jnp.log(jnp.sum(jnp.exp(shifted), axis=-1, keepdims=True))
    o_ref[...] = (shifted - lse).astype(o_ref.dtype)


# --------------------------------------------------------------------------- #
# One-time parameter preparation (call at init, NOT per forward)
# --------------------------------------------------------------------------- #
def prepare_classifier_params(weight, bias, *, matmul_dtype=jnp.bfloat16):
    """Pad + transpose + cast the Linear parameters into kernel layout, once.

    weight: (out_dim, in_dim); bias: (out_dim,).
    Returns:
      w_prepared: (in_dim, out_pad) in `matmul_dtype`, zero in padded columns.
      b_prepared: (1, out_pad) f32, ~-inf in padded columns.
    """
    out_dim, in_dim = weight.shape
    out_pad = _round_up(max(out_dim, 128), 128)

    w_prepared = (
        jnp.zeros((in_dim, out_pad), matmul_dtype)
        .at[:, :out_dim]
        .set(weight.T.astype(matmul_dtype))
    )
    b_prepared = (
        jnp.full((1, out_pad), _NEG_BIG, jnp.float32)
        .at[0, :out_dim]
        .set(bias.astype(jnp.float32))
    )
    return w_prepared, b_prepared


# --------------------------------------------------------------------------- #
# Forward
# --------------------------------------------------------------------------- #
@functools.partial(
    jax.jit, static_argnames=("out_dim", "tm", "out_dtype", "trim_classes")
)
def classifier_forward(
    x,
    w_prepared,
    b_prepared,
    *,
    out_dim=None,
    tm=1024,
    out_dtype=jnp.float32,
    trim_classes=True,
):
    """log_softmax(x @ W.T + b, axis=1) with pre-prepared parameters.

    x: (B, in_dim) f32.  w_prepared/b_prepared from prepare_classifier_params.
    out_dim: number of real classes (needed when trim_classes=True).
    tm: requested batch tile (rounded up to a multiple of 8).
    out_dtype: output dtype; bf16 halves the dominant HBM write if downstream
               tolerates bf16 log-probs.
    trim_classes: slice off the padded class columns (module-parity shape).
               Set False and index [:, :out_dim] downstream to skip the extra
               HBM pass over the output.
    """
    B, in_dim = x.shape
    in_dim_w, out_pad = w_prepared.shape
    assert in_dim == in_dim_w, "x / prepared-weight in_dim mismatch"
    if trim_classes and out_dim is None:
        raise ValueError("out_dim is required when trim_classes=True")

    # --- batch tile: multiple of 8, big enough to amortize per-step overhead,
    #     small enough that the grid has >= 2 steps (v7x megacore sharding). ---
    if B <= 8:
        TM = B  # full-extent block (allowed even when not a multiple of 8)
    else:
        TM = min(_round_up(max(tm, 8), 8), _round_up(_cdiv(B, 2), 8))
    grid_m = _cdiv(B, TM)

    # --- VMEM budget from the actual tile footprint (<= 48 MiB for v7x headroom)
    x_bytes = TM * in_dim * x.dtype.itemsize
    w_bytes = in_dim * out_pad * w_prepared.dtype.itemsize
    b_bytes = out_pad * 4
    o_bytes = TM * out_pad * jnp.dtype(out_dtype).itemsize
    f32_tmp = 2 * TM * out_pad * 4  # in-kernel f32 logits / shifted intermediates
    vmem_needed = 2 * (x_bytes + o_bytes) + 2 * (w_bytes + b_bytes) + f32_tmp + (4 << 20)
    vmem_limit = int(min(max(vmem_needed, 32 << 20), 48 << 20))

    out_padded = pl.pallas_call(
        _classifier_kernel,
        out_shape=jax.ShapeDtypeStruct((B, out_pad), out_dtype),
        grid_spec=pltpu.PrefetchScalarGridSpec(
            num_scalar_prefetch=0,
            grid=(grid_m,),
            in_specs=[
                pl.BlockSpec((TM, in_dim), lambda i: (i, 0)),      # batch-tiled x
                pl.BlockSpec((in_dim, out_pad), lambda i: (0, 0)),  # resident weight
                pl.BlockSpec((1, out_pad), lambda i: (0, 0)),       # resident bias
            ],
            out_specs=pl.BlockSpec((TM, out_pad), lambda i: (i, 0)),
        ),
        compiler_params=pltpu.CompilerParams(
            dimension_semantics=("parallel",),
            vmem_limit_bytes=vmem_limit,
        ),
    )(x, w_prepared, b_prepared)

    if trim_classes and out_pad != out_dim:
        return out_padded[:, :out_dim]
    return out_padded


if __name__ == "__main__":
    # Small shapes consistent with the module. B is not a multiple of the tile
    # so the ragged-last-block path and the multi-step grid are exercised.
    B, IN_DIM, OUT_DIM = 50, 32, 16

    key = jax.random.PRNGKey(0)
    kx, kw, kb = jax.random.split(key, 3)

    # Deterministic init mimicking torch.nn.Linear default U(-1/sqrt(in), 1/sqrt(in)).
    bound = 1.0 / (IN_DIM ** 0.5)
    x = jax.random.normal(kx, (B, IN_DIM), dtype=jnp.float32)
    weight = jax.random.uniform(kw, (OUT_DIM, IN_DIM), jnp.float32, -bound, bound)
    bias = jax.random.uniform(kb, (OUT_DIM,), jnp.float32, -bound, bound)

    ref = jax.nn.log_softmax(x @ weight.T + bias, axis=1)

    # 1) f32 matmul path, small tile -> strict-parity check + grid/ragged-tile coverage.
    w32, b32 = prepare_classifier_params(weight, bias, matmul_dtype=jnp.float32)
    out32 = jax.block_until_ready(
        classifier_forward(x, w32, b32, out_dim=OUT_DIM, tm=16)
    )
    assert out32.shape == (B, OUT_DIM)
    assert jnp.allclose(out32, ref, atol=1e-5, rtol=1e-5), float(
        jnp.max(jnp.abs(out32 - ref))
    )

    # 2) Default production path: bf16 MXU inputs (in-kernel cast), default tile.
    wbf, bbf = prepare_classifier_params(weight, bias)  # bf16 weight
    outbf = jax.block_until_ready(
        classifier_forward(x, wbf, bbf, out_dim=OUT_DIM)
    )
    assert outbf.shape == (B, OUT_DIM)
    assert jnp.allclose(outbf, ref, atol=3e-2, rtol=3e-2), float(
        jnp.max(jnp.abs(outbf - ref))
    )

    print("KERNEL_OK")
</pallas_src>

<mosaic_0001>
module attributes {stable_mosaic.version = 11 : i64} {
  func.func @_classifier_kernel(%arg0: i32, %arg1: memref<16x32xf32, #tpu.memory_space<vmem>>, %arg2: memref<32x128xf32, #tpu.memory_space<vmem>>, %arg3: memref<1x128xf32, #tpu.memory_space<vmem>>, %arg4: memref<16x128xf32, #tpu.memory_space<vmem>>) attributes {dimension_semantics = [#tpu.dimension_semantics<parallel>], iteration_bounds = array<i64: 4>, scalar_prefetch = 0 : i64, scratch_operands = 0 : i64, tpu.core_type = #tpu.core_type<tc>, window_params = [{transform_indices = @transform_0, window_bounds = array<i64: 16, 32>}, {pipeline_mode = #tpu.pipeline_mode<synchronous>, transform_indices = @transform_1, window_bounds = array<i64: 32, 128>}, {pipeline_mode = #tpu.pipeline_mode<synchronous>, transform_indices = @transform_2, window_bounds = array<i64: 1, 128>}, {transform_indices = @transform_3, window_bounds = array<i64: 16, 128>}]} {
    %c0 = arith.constant 0 : index
    %c0_0 = arith.constant 0 : index
    %0 = vector.load %arg1[%c0, %c0_0] : memref<16x32xf32, #tpu.memory_space<vmem>>, vector<16x32xf32>
    %c0_1 = arith.constant 0 : index
    %c0_2 = arith.constant 0 : index
    %1 = vector.load %arg2[%c0_1, %c0_2] : memref<32x128xf32, #tpu.memory_space<vmem>>, vector<32x128xf32>
    %cst = arith.constant dense<0.000000e+00> : vector<16x128xf32>
    %2 = tpu.matmul %0, %1, %cst {dimension_numbers = #tpu.dot_dimension_numbers<[1], [0], [0], [1], [0, 0, 1, 1], [], []>} : vector<16x32xf32>, vector<32x128xf32>, vector<16x128xf32> -> vector<16x128xf32>
    %c0_3 = arith.constant 0 : index
    %c0_4 = arith.constant 0 : index
    %3 = vector.load %arg3[%c0_3, %c0_4] : memref<1x128xf32, #tpu.memory_space<vmem>>, vector<1x128xf32>
    %4 = vector.broadcast %3 : vector<1x128xf32> to vector<16x128xf32>
    %5 = arith.addf %2, %4 : vector<16x128xf32>
    %cst_5 = arith.constant dense<0xFF800000> : vector<16xf32>
    %6 = vector.multi_reduction <maximumf>, %5, %cst_5 [1] : vector<16x128xf32> to vector<16xf32>
    %7 = vector.shape_cast %6 : vector<16xf32> to vector<16x1xf32>
    %8 = vector.broadcast %7 : vector<16x1xf32> to vector<16x128xf32>
    %9 = arith.subf %5, %8 : vector<16x128xf32>
    %10 = math.exp %9 : vector<16x128xf32>
    %cst_6 = arith.constant dense<0.000000e+00> : vector<16xf32>
    %11 = vector.multi_reduction <add>, %10, %cst_6 [1] : vector<16x128xf32> to vector<16xf32>
    %12 = vector.shape_cast %11 : vector<16xf32> to vector<16x1xf32>
    %13 = math.log %12 : vector<16x1xf32>
    %14 = vector.broadcast %13 : vector<16x1xf32> to vector<16x128xf32>
    %15 = arith.subf %9, %14 : vector<16x128xf32>
    %c0_7 = arith.constant 0 : index
    %c0_8 = arith.constant 0 : index
    %16 = vector.load %arg4[%c0_7, %c0_8] : memref<16x128xf32, #tpu.memory_space<vmem>>, vector<16x128xf32>
    tpu.vector_store %arg4[%c0_7, %c0_8], %15 {strides = array<i32>} : memref<16x128xf32, #tpu.memory_space<vmem>>, vector<16x128xf32>,
    return
  }
  func.func @transform_0(%arg0: i32) -> (i32, i32) {
    %c0_i32 = arith.constant 0 : i32
    %c0_i32_0 = arith.constant 0 : i32
    return %arg0, %c0_i32 : i32, i32
  }
  func.func @transform_1(%arg0: i32) -> (i32, i32) {
    %c0_i32 = arith.constant 0 : i32
    %c0_i32_0 = arith.constant 0 : i32
    %c0_i32_1 = arith.constant 0 : i32
    return %c0_i32, %c0_i32_0 : i32, i32
  }
  func.func @transform_2(%arg0: i32) -> (i32, i32) {
    %c0_i32 = arith.constant 0 : i32
    %c0_i32_0 = arith.constant 0 : i32
    %c0_i32_1 = arith.constant 0 : i32
    return %c0_i32, %c0_i32_0 : i32, i32
  }
  func.func @transform_3(%arg0: i32) -> (i32, i32) {
    %c0_i32 = arith.constant 0 : i32
    %c0_i32_0 = arith.constant 0 : i32
    return %arg0, %c0_i32 : i32, i32
  }
}

</mosaic_0001>

<llo_original>
// kernel: classifier_forward.1
$region0: #{classifier_forward.1}
  #allocation0 [shape = 'u32[]', space=smem, size = 0x4, offset = 0x4, fixed_abs, tag = 'smem constant byte address 0x4 - core index']
  #allocation1 [shape = 'u32[144,128]{1,0:T(1,128)}', space=vmem, size = 0x12000, scoped, tag = 'internal scratch']
  %s0 = inlined_call_operand.vmem [shape: f32[50,32], index: 0, kind: input, shape index: {}]
  %s1 = inlined_call_operand.vmem [shape: f32[32,128], index: 1, kind: input, shape index: {}]
  %s2 = inlined_call_operand.vmem [shape: f32[1,128], index: 2, kind: input, shape index: {}]
  %s3 = inlined_call_operand.vmem [shape: f32[50,128], index: 3, kind: output, shape index: {}]
  %s4 = sld [smem:[#allocation0]]
  $region93: #{classifier_forward.1} parent=0
    _
  %s6 = ssub.s32 1, %s4
  %s7 = scalar_select 0, %s6, %s4
  $region1: #{classifier_forward.1} parent=0
    #allocation2 [shape = 'u8[16384]{0}', space=vmem, size = 0x4000, scoped, tag = 'output window, operand 0']
    loop: start=0, step=1, limit=6
    $region2: #{classifier_forward.1} parent=1 // loop_pre_header
      _
    $region3: #{classifier_forward.1} parent=1 // loop_header
      %s9 = sphi 0, %s13
      %p10 = scmp.ge.s32.totalorder %s9, 6
      %s19 = sphi 0, %s21
      %s22 = sphi 0, %s19
      %s23 = sphi 0, %s22
      %s39 = sphi 0, %s23
      %s43 = sphi 0, %s43
      %s45 = sphi 0, %s43
      %s46 = sphi 0, %s45
      %s60 = sphi 0, %s46
      %s64 = sphi 0, %s64
      %s66 = sphi 0, %s64
      %s67 = sphi 0, %s66
      %s81 = sphi 0, %s67
      %s87 = sphi 0, %s89
      %s90 = sphi 0, %s87
      %s91 = sphi 0, %s90
      %s107 = sphi 0, %s91
    $region4: #{classifier_forward.1} parent=1 // loop_header_branch
      %12 = sbr.rel (%p10) target = $region8
    $region5: #{classifier_forward.1} parent=1 // loop_body
      %s14 = ssub.s32 %s9, 1
      %s15 = ssub.s32 %s9, 2
      %s16 = sadd.s32 %s9, 1
      %s17 = ssub.s32 %s9, %s16
      %p18 = scmp.eq.s32.totalorder %s17, 0
      %s20 = sadd.s32 %s19, 1
      %s21 = scalar_select %p18, %s19, %s20
      %p24 = pneg %p18
      %p25 = scmp.eq.s32.totalorder %s9, 3
      %p26 = por %p24, %p25
      %p27 = scmp.ne.s32.totalorder %s19, %s22
      %p28 = scmp.eq.s32.totalorder %s9, 0
      %p29 = por %p27, %p28
      %p30 = scmp.ne.s32.totalorder %s19, %s22
      %p31 = scmp.eq.s32.totalorder %s14, 3
      %p32 = por %p30, %p31
      %p33 = scmp.ne.s32.totalorder %s22, %s23
      %p34 = scmp.eq.s32.totalorder %s14, 0
      %p35 = por %p33, %p34
      %p36 = scmp.ne.s32.totalorder %s22, %s23
      %p37 = scmp.eq.s32.totalorder %s15, 3
      %p38 = por %p36, %p37
      %p40 = scmp.ne.s32.totalorder %s23, %s39
      %p41 = scmp.eq.s32.totalorder %s15, 0
      %p42 = por %p40, %p41
      %s44 = sadd.s32 %s43, 1
      %p47 = scmp.eq.s32.totalorder %s9, 3
      %p48 = scmp.ne.s32.totalorder %s43, %s45
      %p49 = scmp.eq.s32.totalorder %s9, 0
      %p50 = por %p48, %p49
      %p51 = scmp.ne.s32.totalorder %s43, %s45
      %p52 = scmp.eq.s32.totalorder %s14, 3
      %p53 = por %p51, %p52
      %p54 = scmp.ne.s32.totalorder %s45, %s46
      %p55 = scmp.eq.s32.totalorder %s14, 0
      %p56 = por %p54, %p55
      %p57 = scmp.ne.s32.totalorder %s45, %s46
      %p58 = scmp.eq.s32.totalorder %s15, 3
      %p59 = por %p57, %p58
      %p61 = scmp.ne.s32.totalorder %s46, %s60
      %p62 = scmp.eq.s32.totalorder %s15, 0
      %p63 = por %p61, %p62
      %s65 = sadd.s32 %s64, 1
      %p68 = scmp.eq.s32.totalorder %s9, 3
      %p69 = scmp.ne.s32.totalorder %s64, %s66
      %p70 = scmp.eq.s32.totalorder %s9, 0
      %p71 = por %p69, %p70
      %p72 = scmp.ne.s32.totalorder %s64, %s66
      %p73 = scmp.eq.s32.totalorder %s14, 3
      %p74 = por %p72, %p73
      %p75 = scmp.ne.s32.totalorder %s66, %s67
      %p76 = scmp.eq.s32.totalorder %s14, 0
      %p77 = por %p75, %p76
      %p78 = scmp.ne.s32.totalorder %s66, %s67
      %p79 = scmp.eq.s32.totalorder %s15, 3
      %p80 = por %p78, %p79
      %p82 = scmp.ne.s32.totalorder %s67, %s81
      %p83 = scmp.eq.s32.totalorder %s15, 0
      %p84 = por %p82, %p83
      %s85 = ssub.s32 %s9, %s16
      %p86 = scmp.eq.s32.totalorder %s85, 0
      %s88 = sadd.s32 %s87, 1
      %s89 = scalar_select %p86, %s87, %s88
      %p92 = pneg %p86
      %p93 = scmp.eq.s32.totalorder %s9, 3
      %p94 = por %p92, %p93
      %p95 = scmp.ne.s32.totalorder %s87, %s90
      %p96 = scmp.eq.s32.totalorder %s9, 0
      %p97 = por %p95, %p96
      %p98 = scmp.ne.s32.totalorder %s87, %s90
      %p99 = scmp.eq.s32.totalorder %s14, 3
      %p100 = por %p98, %p99
      %p101 = scmp.ne.s32.totalorder %s90, %s91
      %p102 = scmp.eq.s32.totalorder %s14, 0
      %p103 = por %p101, %p102
      %p104 = scmp.ne.s32.totalorder %s90, %s91
      %p105 = scmp.eq.s32.totalorder %s15, 3
      %p106 = por %p104, %p105
      %p108 = scmp.ne.s32.totalorder %s91, %s107
      %p109 = scmp.eq.s32.totalorder %s15, 0
      %p110 = por %p108, %p109
      %p111 = scmp.le.s32.totalorder 1, %s9
      %p112 = scmp.lt.s32.totalorder %s9, 5
      %p113 = pnand %p111, %p112
      %p114 = pneg %p113
      // Predicated region
      $region9: #{classifier_forward.1} parent=5 // pred_check
        _
      $region10: #{classifier_forward.1} parent=5 // pred_check_branch
        %116 = sbr.rel (%p113) target = $region12
      $region11: #{classifier_forward.1} parent=5 // pred_region
        %s117 = ssub.s32 %s9, 1
        // Predicated region
        $region13: #{classifier_forward.1} parent=11 // pred_check
          %p118 = pneg %p56
        $region14: #{classifier_forward.1} parent=11 // pred_check_branch
          %120 = sbr.rel (%p118) target = $region16
        $region15: #{classifier_forward.1} parent=11 // pred_region
          _
        $region16: #{classifier_forward.1} parent=11 // pred_fallthru
          _
        // Predicated region
        $region17: #{classifier_forward.1} parent=11 // pred_check
          %p121 = pneg %p77
        $region18: #{classifier_forward.1} parent=11 // pred_check_branch
          %123 = sbr.rel (%p121) target = $region20
        $region19: #{classifier_forward.1} parent=11 // pred_region
          _
        $region20: #{classifier_forward.1} parent=11 // pred_fallthru
          _
      $region12: #{classifier_forward.1} parent=5 // pred_fallthru
        _
      %p124 = scmp.lt.s32.totalorder %s9, 4
      // Predicated region
      $region21: #{classifier_forward.1} parent=5 // pred_check
        %p125 = pneg %p124
      $region22: #{classifier_forward.1} parent=5 // pred_check_branch
        %127 = sbr.rel (%p125) target = $region24
      $region23: #{classifier_forward.1} parent=5 // pred_region
        // Predicated region
        $region25: #{classifier_forward.1} parent=23 // pred_check
          %p128 = pneg %p29
        $region26: #{classifier_forward.1} parent=23 // pred_check_branch
          %130 = sbr.rel (%p128) target = $region28
        $region27: #{classifier_forward.1} parent=23 // pred_region
          %s131 = smul.u32 2, %s9
          %s132 = ssub.s32 7, %s131
          %p133 = scmp.lt.s32.totalorder %s132, 2
          %s134 = scalar_select %p133, %s132, 2
          %s135 = smul.u32 128, %s134
          %p136 = scmp.lt.s32.totalorder %s131, 6
          %s137 = scalar_select %p136, %s131, 6
          %s138 = smul.addr %s137, 8
          %s139 = scalar_lea.vmem %s0, %s138
          %s140 = smul.u32 2, %s9
          %s141 = ssub.s32 7, %s140
          %p142 = scmp.lt.s32.totalorder %s141, 2
          %s143 = scalar_select %p142, %s141, 2
          %s144 = smul.u32 128, %s143
        $region28: #{classifier_forward.1} parent=23 // pred_fallthru
          _
      $region24: #{classifier_forward.1} parent=5 // pred_fallthru
        _
      %p145 = scmp.le.s32.totalorder 1, %s9
      %p146 = scmp.lt.s32.totalorder %s9, 5
      %p147 = pnand %p145, %p146
      %p148 = pneg %p147
      // Predicated region
      $region29: #{classifier_forward.1} parent=5 // pred_check
        _
      $region30: #{classifier_forward.1} parent=5 // pred_check_branch
        %150 = sbr.rel (%p147) target = $region32
      $region31: #{classifier_forward.1} parent=5 // pred_region
        %s151 = ssub.s32 %s9, 1
        %s152 = smul.u32 2, %s14
        %s153 = ssub.s32 7, %s152
        %p154 = scmp.lt.s32.totalorder %s153, 2
        %s155 = scalar_select %p154, %s153, 2
        %s156 = smul.u32 128, %s155
        %p157 = scmp.lt.s32.totalorder %s152, 6
        %s158 = scalar_select %p157, %s152, 6
        %s159 = smul.addr %s158, 8
        %s160 = scalar_lea.vmem %s0, %s159
        %p161 = pneg %p35
        %p162 = pneg %p32
        %p163 = pneg %p56
        %p164 = pneg %p53
        %p165 = pneg %p77
        %p166 = pneg %p74
        %p167 = pneg %p103
        %p168 = pneg %p100
        %s169 = sand.u32 %s90, 1
        %s170 = sand.u32 %s90, 1
        %s171 = smul.addr %s170, 16
        %s172 = scalar_lea.vmem [#allocation2], %s171
        %s173 = smul.u32 2, %s14
        %s174 = ssub.s32 7, %s173
        %p175 = scmp.lt.s32.totalorder %s174, 2
        %s176 = scalar_select %p175, %s174, 2
        %s177 = smul.u32 128, %s176
        %p178 = scmp.lt.s32.totalorder %s173, 6
        %s179 = scalar_select %p178, %s173, 6
        %s180 = smul.addr %s179, 8
        %s181 = scalar_lea.vmem %s0, %s180
        %s182 = smul.u32 2, %s14
        %s183 = ssub.s32 7, %s182
        %p184 = scmp.lt.s32.totalorder %s183, 2
        %s185 = scalar_select %p184, %s183, 2
        %s186 = smul.u32 128, %s185
        %s187 = smul.u32 2, %s14
        %s188 = ssub.s32 7, %s187
        %p189 = scmp.lt.s32.totalorder %s188, 2
        %s190 = scalar_select %p189, %s188, 2
        %s191 = smul.u32 128, %s190
        %v192 = vld [vmem:[%s181] sm:$0xff]
        %v193 = vld [vmem:[%s181 + $0x8] sm:$0xff]
        %v194 = vld [vmem:[%s1] sm:$0xff]
        %v195 = vld [vmem:[%s1 + $0x8] sm:$0xff]
        %v196 = vld [vmem:[%s1 + $0x10] sm:$0xff]
        %v197 = vld [vmem:[%s1 + $0x18] sm:$0xff]
        %v198 = vld [vmem:[%s2] sm:$0x1]
        %v200 = vlaneseq
        %v201 = vshrl.u32 %v200, 7
        %v202 = vsub.s32 0, %v201
        %v203 = vrot.slane %v198, %v202
        %vm205 = vcmask 261120
        %v207 = vsel %vm205, %v192, 0
        %v210 = vsel %vm205, %v193, 0
        %212 = vmatprep.subr.mxu0 0.0
        %213 = vmatpush1.msra.mxu0 %v194
        %214 = vmatprep.subr.mxu0 0.0
        %215 = vmatpush1.msra.mxu0 %v195
        %216 = vmatprep.subr.mxu0 0.0
        %217 = vmatpush1.msra.mxu0 %v196
        %218 = vmatprep.subr.mxu0 0.0
        %219 = vmatpush1.msra.mxu0 %v197
        %220 = vmatprep.subr.mxu0 0.0
        %221 = vmatpush1.msra.mxu0 0.0
        %222 = vmatprep.subr.mxu0 0.0
        %223 = vmatpush1.msra.mxu0 0.0
        %224 = vmatprep.subr.mxu0 0.0
        %225 = vmatpush1.msra.mxu0 0.0
        %226 = vmatprep.subr.mxu0 0.0
        %227 = vmatpush1.msra.mxu0 0.0
        %228 = vmatprep.subr.mxu0 0.0
        %229 = vmatpush1.msra.mxu0 0.0
        %230 = vmatprep.subr.mxu0 0.0
        %231 = vmatpush1.msra.mxu0 0.0
        %232 = vmatprep.subr.mxu0 0.0
        %233 = vmatpush1.msra.mxu0 0.0
        %234 = vmatprep.subr.mxu0 0.0
        %235 = vmatpush1.msra.mxu0 0.0
        %236 = vmatprep.subr.mxu0 0.0
        %237 = vmatpush1.msra.mxu0 0.0
        %238 = vmatprep.subr.mxu0 0.0
        %239 = vmatpush1.msra.mxu0 0.0
        %240 = vmatprep.subr.mxu0 0.0
        %241 = vmatpush1.msra.mxu0 0.0
        %242 = vmatprep.subr.mxu0 0.0
        %243 = vmatpush1.msra.mxu0 0.0
        %244 = vmatprep.subr.mxu0 0.0
        %245 = vmatpush1.msra.mxu0 0.0
        %246 = vmatprep.subr.mxu0 0.0
        %247 = vmatpush1.msra.mxu0 0.0
        %248 = vmatprep.subr.mxu0 0.0
        %249 = vmatpush1.msra.mxu0 0.0
        %250 = vmatprep.subr.mxu0 0.0
        %251 = vmatpush1.msra.mxu0 0.0
        %252 = vmatprep.subr.mxu0 0.0
        %253 = vmatpush1.msra.mxu0 0.0
        %254 = vmatprep.subr.mxu0 0.0
        %255 = vmatpush1.msra.mxu0 0.0
        %256 = vmatprep.subr.mxu0 0.0
        %257 = vmatpush1.msra.mxu0 0.0
        %258 = vmatprep.subr.mxu0 0.0
        %259 = vmatpush1.msra.mxu0 0.0
        %260 = vmatprep.subr.mxu0 0.0
        %261 = vmatpush1.msra.mxu0 0.0
        %262 = vmatprep.subr.mxu0 0.0
        %263 = vmatpush1.msra.mxu0 0.0
        %264 = vmatprep.subr.mxu0 0.0
        %265 = vmatpush1.msra.mxu0 0.0
        %266 = vmatprep.subr.mxu0 0.0
        %267 = vmatpush1.msra.mxu0 0.0
        %268 = vmatprep.subr.mxu0 0.0
        %269 = vmatpush1.msra.mxu0 0.0
        %270 = vmatprep.subr.mxu0 0.0
        %271 = vmatpush1.msra.mxu0 0.0
        %272 = vmatprep.subr.mxu0 0.0
        %273 = vmatpush1.msra.mxu0 0.0
        %274 = vmatprep.subr.mxu0 0.0
        %275 = vmatpush1.msra.mxu0 0.0
        %276 = vmatprep.mubr.f32.mxu0 0.0
        %277 = vmatmul.mubr.f32.gmra.mrb[0].mxu0 %v207
        %v278 = vpop.f32.mrb[0].mxu0
        %v279 = vadd.f32 %v203, %v278
        %v280 = vpop.f32.mrb[0].mxu0
        %281 = vmatprep.mubr.f32.mxu0 0.0
        %282 = vmatmul.mubr.f32.gmra.mrb[0].mxu0 %v210
        %v283 = vpop.f32.mrb[0].mxu0
        %v284 = vadd.f32 %v203, %v283
        %v285 = vpop.f32.mrb[0].mxu0
        %286 = vdwg.mxu0
        %287 = vmax.xlane.f32.xlu0 %v279
        %v288 = vpop.xlane.xlu0 %287
        %289 = vmax.xlane.f32.xlu0 %v284
        %v290 = vpop.xlane.xlu0 %289
        %v291 = vsub.f32 %v279, %v288
        %v292 = vsub.f32 %v284, %v290
        %v293 = vmul.f32 %v291, 1.442695
        %v294 = vpow.pop %v293
        %v295 = vmul.f32 %v292, 1.442695
        %v296 = vpow.pop %v295
        %297 = vadd.xlane.f32.xlu0 %v294
        %v298 = vpop.xlane.xlu0 %297
        %299 = vadd.xlane.f32.xlu0 %v296
        %v300 = vpop.xlane.xlu0 %299
        %v301 = vlog2.pop %v298
        %v302 = vmul.f32 %v301, 0.6931472
        %v303 = vlog2.pop %v300
        %v304 = vmul.f32 %v303, 0.6931472
        %v305 = vsub.f32 %v291, %v302
        %v306 = vsub.f32 %v292, %v304
        %307 = vst [vmem:[%s172] sm:$0xff] %v305
        %308 = vst [vmem:[%s172 + $0x8] sm:$0xff] %v306
        %s309 = sand.u32 %s90, 1
        %s310 = sand.u32 %s90, 1
        %s311 = smul.addr %s310, 16
        %s312 = scalar_lea.vmem [#allocation2], %s311
        // Predicated region
        $region33: #{classifier_forward.1} parent=31 // pred_check
          %p313 = pneg %p100
        $region34: #{classifier_forward.1} parent=31 // pred_check_branch
          %315 = sbr.rel (%p313) target = $region36
        $region35: #{classifier_forward.1} parent=31 // pred_region
          %s316 = smul.u32 2, %s14
          %s317 = ssub.s32 7, %s316
          %p318 = scmp.lt.s32.totalorder %s317, 2
          %s319 = scalar_select %p318, %s317, 2
          %s320 = smul.u32 128, %s319
          %p321 = scmp.ne.s32.totalorder 0, %s320
          %s322 = smul.addr %s316, 8
          %s323 = scalar_lea.vmem %s3, %s322
          // Predicated region
          $region37: #{classifier_forward.1} parent=35 // pred_check
            %p324 = pneg %p321
          $region38: #{classifier_forward.1} parent=35 // pred_check_branch
            %326 = sbr.rel (%p324) target = $region40
          $region39: #{classifier_forward.1} parent=35 // pred_region
            // Predicated region
            $region41: #{classifier_forward.1} parent=39 // pred_check
              _
            $region42: #{classifier_forward.1} parent=39 // pred_check_branch
              %328 = sbr.rel (0) target = $region44
            $region43: #{classifier_forward.1} parent=39 // pred_region
              // Predicated region
              $region63: #{classifier_forward.1} parent=43 // pred_check
                _
              $region64: #{classifier_forward.1} parent=43 // pred_check_branch
                %379 = sbr.rel (0) target = $region66
              $region65: #{classifier_forward.1} parent=43 // pred_region
                %s380 = sshrl.u32 %s319, 1
                // While loop
                $region67: #{classifier_forward.1} parent=65 // loop_pre_header
                  _
                $region68: #{classifier_forward.1} parent=65 // loop_header
                  %s382 = sphi 0, %s384
                  %p383 = scmp.ge.s32.totalorder %s382, %s380
                  %s387 = sphi 0, %s396
                  %s388 = sphi %s312, %s399
                  %s389 = sphi %s323, %s400
                $region69: #{classifier_forward.1} parent=65 // loop_header_branch
                  %386 = sbr.rel (%p383) target = $region73
                $region70: #{classifier_forward.1} parent=65 // loop_body
                  %v390 = vld [vmem:[%s388] sm:$0xff]
                  %391 = vst [vmem:[%s389] sm:$0xff] %v390
                  %v392 = vld [vmem:[%s388 + $0x8] sm:$0xff]
                  %393 = vst [vmem:[%s389 + $0x8] sm:$0xff] %v392
                  %s394 = sadd.s32 1, %s387
                  %p395 = scmp.ge.s32.totalorder %s394, %s380
                  %s396 = scalar_select %p395, 0, %s394
                  %s397 = smul.u32 %s396, 16
                  %s398 = smul.u32 %s396, 16
                  %s399 = scalar_lea.vmem %s312, %s397 [#allocation2]
                  %s400 = scalar_lea.vmem %s323, %s398
                $region71: #{classifier_forward.1} parent=65 // loop_footer
                  %s384 = sadd.s32 %s382, 1
                $region72: #{classifier_forward.1} parent=65 // loop_footer_branch
                  %381 = sbr.rel target = $region68
                $region73: #{classifier_forward.1} parent=65 // loop_exit
                  _
                %s401 = sshrl.u32 %s319, 1
                %s402 = sand.u32 %s319, 1
                %s403 = smul.u32 %s401, 2
                %s404 = smul.u32 8, %s403
                %s405 = scalar_lea.vmem %s312, %s404 [#allocation2]
                %s406 = smul.u32 8, %s403
                %s407 = scalar_lea.vmem %s323, %s406
                // While loop
                $region74: #{classifier_forward.1} parent=65 // loop_pre_header
                  _
                $region75: #{classifier_forward.1} parent=65 // loop_header
                  %s409 = sphi 0, %s411
                  %p410 = scmp.ge.s32.totalorder %s409, %s402
                  %s414 = sphi 0, %s421
                  %s415 = sphi %s405, %s424
                  %s416 = sphi %s407, %s425
                $region76: #{classifier_forward.1} parent=65 // loop_header_branch
                  %413 = sbr.rel (%p410) target = $region80
                $region77: #{classifier_forward.1} parent=65 // loop_body
                  %v417 = vld [vmem:[%s415] sm:$0xff]
                  %418 = vst [vmem:[%s416] sm:$0xff] %v417
                  %s419 = sadd.s32 1, %s414
                  %p420 = scmp.ge.s32.totalorder %s419, %s402
                  %s421 = scalar_select %p420, 0, %s419
                  %s422 = smul.u32 %s421, 8
                  %s423 = smul.u32 %s421, 8
                  %s424 = scalar_lea.vmem %s405, %s422 [#allocation2]
                  %s425 = scalar_lea.vmem %s407, %s423
                $region78: #{classifier_forward.1} parent=65 // loop_footer
                  %s411 = sadd.s32 %s409, 1
                $region79: #{classifier_forward.1} parent=65 // loop_footer_branch
                  %408 = sbr.rel target = $region75
                $region80: #{classifier_forward.1} parent=65 // loop_exit
                  _
              $region66: #{classifier_forward.1} parent=43 // pred_fallthru
                _
              // Predicated region
              $region81: #{classifier_forward.1} parent=43 // pred_check
                _
              $region82: #{classifier_forward.1} parent=43 // pred_check_branch
                %427 = sbr.rel target = $region84
              $region83: #{classifier_forward.1} parent=43 // pred_region
                _
              $region84: #{classifier_forward.1} parent=43 // pred_fallthru
                _
            $region44: #{classifier_forward.1} parent=39 // pred_fallthru
              _
            // Predicated region
            $region45: #{classifier_forward.1} parent=39 // pred_check
              _
            $region46: #{classifier_forward.1} parent=39 // pred_check_branch
              %330 = sbr.rel target = $region48
            $region47: #{classifier_forward.1} parent=39 // pred_region
              %s332 = sshrl.u32 %s319, 1
              // While loop
              $region49: #{classifier_forward.1} parent=47 // loop_pre_header
                _
              $region50: #{classifier_forward.1} parent=47 // loop_header
                %s334 = sphi 0, %s336
                %p335 = scmp.ge.s32.totalorder %s334, %s332
                %s339 = sphi 0, %s348
                %s340 = sphi %s312, %s351
                %s341 = sphi %s323, %s352
              $region51: #{classifier_forward.1} parent=47 // loop_header_branch
                %338 = sbr.rel (%p335) target = $region55
              $region52: #{classifier_forward.1} parent=47 // loop_body
                %v342 = vld [vmem:[%s340] sm:$0xff]
                %343 = vst [vmem:[%s341] sm:$0xff] %v342
                %v344 = vld [vmem:[%s340 + $0x8] sm:$0xff]
                %345 = vst [vmem:[%s341 + $0x8] sm:$0xff] %v344
                %s346 = sadd.s32 1, %s339
                %p347 = scmp.ge.s32.totalorder %s346, %s332
                %s348 = scalar_select %p347, 0, %s346
                %s349 = smul.u32 %s348, 16
                %s350 = smul.u32 %s348, 16
                %s351 = scalar_lea.vmem %s312, %s349 [#allocation2]
                %s352 = scalar_lea.vmem %s323, %s350
              $region53: #{classifier_forward.1} parent=47 // loop_footer
                %s336 = sadd.s32 %s334, 1
              $region54: #{classifier_forward.1} parent=47 // loop_footer_branch
                %333 = sbr.rel target = $region50
              $region55: #{classifier_forward.1} parent=47 // loop_exit
                _
              %s353 = sshrl.u32 %s319, 1
              %s354 = sand.u32 %s319, 1
              %s355 = smul.u32 %s353, 2
              %s356 = smul.u32 8, %s355
              %s357 = scalar_lea.vmem %s312, %s356 [#allocation2]
              %s358 = smul.u32 8, %s355
              %s359 = scalar_lea.vmem %s323, %s358
              // While loop
              $region56: #{classifier_forward.1} parent=47 // loop_pre_header
                _
              $region57: #{classifier_forward.1} parent=47 // loop_header
                %s361 = sphi 0, %s363
                %p362 = scmp.ge.s32.totalorder %s361, %s354
                %s366 = sphi 0, %s373
                %s367 = sphi %s357, %s376
                %s368 = sphi %s359, %s377
              $region58: #{classifier_forward.1} parent=47 // loop_header_branch
                %365 = sbr.rel (%p362) target = $region62
              $region59: #{classifier_forward.1} parent=47 // loop_body
                %v369 = vld [vmem:[%s367] sm:$0xff]
                %370 = vst [vmem:[%s368] sm:$0xff] %v369
                %s371 = sadd.s32 1, %s366
                %p372 = scmp.ge.s32.totalorder %s371, %s354
                %s373 = scalar_select %p372, 0, %s371
                %s374 = smul.u32 %s373, 8
                %s375 = smul.u32 %s373, 8
                %s376 = scalar_lea.vmem %s357, %s374 [#allocation2]
                %s377 = scalar_lea.vmem %s359, %s375
              $region60: #{classifier_forward.1} parent=47 // loop_footer
                %s363 = sadd.s32 %s361, 1
              $region61: #{classifier_forward.1} parent=47 // loop_footer_branch
                %360 = sbr.rel target = $region57
              $region62: #{classifier_forward.1} parent=47 // loop_exit
                _
            $region48: #{classifier_forward.1} parent=39 // pred_fallthru
              _
          $region40: #{classifier_forward.1} parent=35 // pred_fallthru
            _
          %428 = vnop
        $region36: #{classifier_forward.1} parent=31 // pred_fallthru
          _
      $region32: #{classifier_forward.1} parent=5 // pred_fallthru
        _
      %p429 = scmp.le.s32.totalorder 2, %s9
      // Predicated region
      $region85: #{classifier_forward.1} parent=5 // pred_check
        %p430 = pneg %p429
      $region86: #{classifier_forward.1} parent=5 // pred_check_branch
        %432 = sbr.rel (%p430) target = $region88
      $region87: #{classifier_forward.1} parent=5 // pred_region
        %s433 = ssub.s32 %s9, 2
        // Predicated region
        $region89: #{classifier_forward.1} parent=87 // pred_check
          %p434 = pneg %p106
        $region90: #{classifier_forward.1} parent=87 // pred_check_branch
          %436 = sbr.rel (%p434) target = $region92
        $region91: #{classifier_forward.1} parent=87 // pred_region
          %s437 = sand.u32 %s91, 1
          %s438 = sand.u32 %s91, 1
          %s439 = smul.addr %s438, 16
          %s440 = scalar_lea.vmem [#allocation2], %s439
        $region92: #{classifier_forward.1} parent=87 // pred_fallthru
          _
      $region88: #{classifier_forward.1} parent=5 // pred_fallthru
        _
    $region6: #{classifier_forward.1} parent=1 // loop_footer
      %s13 = sadd.s32 1, %s9
    $region7: #{classifier_forward.1} parent=1 // loop_footer_branch
      %8 = sbr.rel target = $region3
    $region8: #{classifier_forward.1} parent=1 // loop_exit
      _

</llo_original>
